<compile_context>
chip_gen: v5e
topology: v5e:2x2
jax: 0.10.0
libtpu: 0.0.40
codegen_flags: <defaults>
</compile_context>

<pallas_src>
import functools

import jax
import jax.numpy as jnp
from jax.experimental import pallas as pl
from jax.experimental.pallas import tpu as pltpu

GLOVE_STD = 0.3836

# One-hot/MXU path crossover: keep it where MXU time <= HBM writeback time on
# every generation (~500 on v5e, ~600 on v7x, ~1300 on v6e) -> 512 is safe.
_ONEHOT_VOCAB_MAX = 512


def _round_up(x: int, m: int) -> int:
    return ((x + m - 1) // m) * m


def _vmem_capacity_bytes() -> int:
    """Per-TensorCore VMEM capacity (generation-aware); conservative fallback."""
    try:
        return int(pltpu.get_tpu_info().vmem_capacity_bytes)
    except Exception:
        return 64 << 20  # v7x per-TC VMEM (most restrictive generation)


# --------------------------------------------------------------------------
# Path 1: tiny vocab -> whole table resident in VMEM, gather = one-hot matmul.
# --------------------------------------------------------------------------
def _onehot_gather_kernel(ids_ref, table_ref, out_ref):
    # ids_ref:   (TT, 1)  int32  (VMEM tile of token ids for this block)
    # table_ref: (V, Dp)  float  (full embedding table, resident in VMEM)
    # out_ref:   (TT, Dp) float
    ids = ids_ref[...]                                     # (TT, 1)
    tt = ids.shape[0]
    v = table_ref.shape[0]
    vocab_iota = jax.lax.broadcasted_iota(jnp.int32, (tt, v), 1)
    onehot = (ids == vocab_iota).astype(table_ref.dtype)   # (TT, V), exact 0/1
    out_ref[...] = jnp.dot(
        onehot, table_ref[...], preferred_element_type=jnp.float32
    ).astype(out_ref.dtype)


def _embed_resident(ids_2d: jax.Array, table: jax.Array, token_block: int):
    tp = ids_2d.shape[0]
    v, dp = table.shape
    num_blocks = tp // token_block
    itemsize = table.dtype.itemsize
    cap = _vmem_capacity_bytes()

    bytes_accessed = v * dp * itemsize + tp * 4 + tp * dp * itemsize
    flops = 2 * tp * v * dp
    vmem_need = (
        2 * v * dp * itemsize              # table (default double-buffered)
        + 2 * token_block * dp * itemsize  # double-buffered output tile
        + 2 * token_block * 4              # double-buffered id tile
        + 2 * token_block * v * 4          # onehot f32 temporary + iota
        + (2 << 20)                        # headroom / compiler scratch
    )
    # Generation-aware limit: never budget more than ~60% of physical VMEM
    # (v7x has only 64 MiB per TC).
    vmem_limit = int(min(max(vmem_need, 32 << 20), int(cap * 0.6)))

    return pl.pallas_call(
        _onehot_gather_kernel,
        out_shape=jax.ShapeDtypeStruct((tp, dp), table.dtype),
        grid_spec=pltpu.PrefetchScalarGridSpec(
            num_scalar_prefetch=0,
            grid=(num_blocks,),
            in_specs=[
                # Per-block token ids (dense (TT, 1) tile).
                pl.BlockSpec((token_block, 1), lambda i: (i, 0)),
                # Whole table, constant block index -> resident across steps.
                pl.BlockSpec((v, dp), lambda i: (0, 0)),
            ],
            out_specs=pl.BlockSpec((token_block, dp), lambda i: (i, 0)),
        ),
        compiler_params=pltpu.CompilerParams(
            dimension_semantics=("parallel",),   # token blocks independent
            vmem_limit_bytes=vmem_limit,
        ),
        cost_estimate=pl.CostEstimate(
            flops=flops, transcendentals=0, bytes_accessed=bytes_accessed
        ),
    )(ids_2d, table)


# --------------------------------------------------------------------------
# Path 2: large vocab -> batched manual-DMA row gather from HBM.
# --------------------------------------------------------------------------
def _dma_gather_kernel(ids_ref, table_hbm, out_ref, row_buf, sems, *,
                       token_block: int, window: int):
    # ids_ref:   SMEM (TP,) int32    (scalar-prefetched flat token ids)
    # table_hbm: (V, D) in HBM       (memory_space=pl.ANY, manual DMA)
    # out_ref:   (TT, D) VMEM output tile
    # row_buf:   (TT, D) VMEM scratch (gather destination)
    # sems:      (W,) DMA semaphore ring (W copies in flight, wait-as-you-go)
    base = pl.program_id(0) * token_block

    def start_fetch(i, slot):
        tok = ids_ref[base + i]
        pltpu.make_async_copy(
            table_hbm.at[pl.ds(tok, 1)],
            row_buf.at[pl.ds(i, 1)],
            sems.at[slot],
        ).start()

    # Prime the window (static small loop).
    for slot in range(window):
        start_fetch(slot, slot)

    @pl.loop(0, token_block)
    def _(i):
        slot = i % window
        # Wait for row i (descriptor only carries the byte count + semaphore).
        pltpu.make_async_copy(
            table_hbm.at[pl.ds(0, 1)],
            row_buf.at[pl.ds(0, 1)],
            sems.at[slot],
        ).wait()

        @pl.when(i + window < token_block)
        def _():
            start_fetch(i + window, slot)

    # ONE dense (TT, D) writeback per grid step (unmasked lane-dense store).
    out_ref[...] = row_buf[...]


def _embed_dma_gather(flat_ids: jax.Array, table: jax.Array,
                      token_block: int, window: int):
    t = flat_ids.shape[0]
    tp = _round_up(max(t, token_block), token_block)
    if tp != t:
        flat_ids = jnp.pad(flat_ids, (0, tp - t))   # pad ids -> row 0, sliced off
    _, d = table.shape
    itemsize = table.dtype.itemsize
    num_blocks = tp // token_block

    kernel = functools.partial(
        _dma_gather_kernel, token_block=token_block, window=window)

    return pl.pallas_call(
        kernel,
        out_shape=jax.ShapeDtypeStruct((tp, d), table.dtype),
        grid_spec=pltpu.PrefetchScalarGridSpec(
            num_scalar_prefetch=1,                 # token ids -> SMEM
            grid=(num_blocks,),
            in_specs=[pl.BlockSpec(memory_space=pl.ANY)],   # table stays in HBM
            out_specs=pl.BlockSpec((token_block, d), lambda i, ids: (i, 0)),
            scratch_shapes=[
                pltpu.VMEM((token_block, d), table.dtype),
                pltpu.SemaphoreType.DMA((window,)),
            ],
        ),
        compiler_params=pltpu.CompilerParams(
            dimension_semantics=("parallel",),     # token blocks independent
        ),
        cost_estimate=pl.CostEstimate(
            flops=0, transcendentals=0,
            bytes_accessed=tp * 4 + 2 * tp * d * itemsize,
        ),
    )(flat_ids, table)


# --------------------------------------------------------------------------
# Public wrapper: GloveEmbedder.forward
# --------------------------------------------------------------------------
@functools.partial(jax.jit, static_argnames=("token_block", "gather_window"))
def glove_embed(seq_ids: jax.Array, table: jax.Array, *,
                token_block: int = 256, gather_window: int = 8):
    """Embedding lookup: seq_ids [B, S] int, table [V, D] -> [B, S, D]."""
    b, s = seq_ids.shape
    v, d = table.shape
    t = b * s

    # Bounds-safe flat ids.
    # TODO(synk): torch.nn.Embedding raises on out-of-range ids; we clamp
    # (padded tokens hit row 0 and are sliced off, genuinely bad ids are
    # silently clamped).
    flat_ids = jnp.clip(seq_ids.reshape(t).astype(jnp.int32), 0, v - 1)

    dp = _round_up(d, 128)
    itemsize = table.dtype.itemsize
    table_bytes = v * dp * itemsize
    use_onehot = (v <= _ONEHOT_VOCAB_MAX
                  and table_bytes <= _vmem_capacity_bytes() // 3)

    if use_onehot:
        # Lane-dense embedding dim; cheap here since V is tiny.
        tbl = jnp.pad(table, ((0, 0), (0, dp - d))) if dp != d else table
        tp = _round_up(max(t, token_block), token_block)
        if tp != t:
            flat_ids = jnp.pad(flat_ids, (0, tp - t))
        out_flat = _embed_resident(flat_ids.reshape(tp, 1), tbl, token_block)
        return out_flat[:t, :d].reshape(b, s, d)

    # Large-vocab path: no table re-padding, batched manual-DMA gather.
    out_flat = _embed_dma_gather(flat_ids, table, token_block, gather_window)
    return out_flat[:t].reshape(b, s, d)


def make_embedding_table(key, num_embeddings: int, embedding_dim: int):
    # Deterministic synthetic stand-in for the GloVe weights_matrix:
    # N(0, GLOVE_STD) entries, matching the module's fallback init.
    return GLOVE_STD * jax.random.normal(
        key, (num_embeddings, embedding_dim), dtype=jnp.float32
    )


if __name__ == "__main__":
    key = jax.random.PRNGKey(0)
    k_w, k_ids, k_w2, k_ids2 = jax.random.split(key, 4)

    batch, seq_len = 2, 8

    # --- Small-vocab case (resident one-hot/MXU path) ---
    vocab_size, embedding_dim = 64, 128
    table = make_embedding_table(k_w, vocab_size, embedding_dim)
    seq = jax.random.randint(
        k_ids, (batch, seq_len), minval=0, maxval=vocab_size, dtype=jnp.int32
    )
    out = glove_embed(seq, table)
    jax.block_until_ready(out)
    ref = jnp.take(table, seq, axis=0)
    assert out.shape == (batch, seq_len, embedding_dim)
    assert jnp.allclose(out, ref, atol=1e-6), "onehot path mismatch vs reference"

    # --- Larger-vocab case (forces the batched manual-DMA gather path;
    #     native non-128 embedding dim, mirroring real GloVe D=300) ---
    vocab2, dim2 = 2048, 300
    table2 = GLOVE_STD * jax.random.normal(k_w2, (vocab2, dim2), dtype=jnp.float32)
    seq2 = jax.random.randint(
        k_ids2, (batch, seq_len), minval=0, maxval=vocab2, dtype=jnp.int32
    )
    out2 = glove_embed(seq2, table2)
    jax.block_until_ready(out2)
    ref2 = jnp.take(table2, seq2, axis=0)
    assert out2.shape == (batch, seq_len, dim2)
    assert jnp.allclose(out2, ref2, atol=1e-6), "DMA-gather path mismatch vs reference"

    print("KERNEL_OK")
</pallas_src>

<mosaic_0001>
module attributes {stable_mosaic.version = 11 : i64} {
  func.func @_onehot_gather_kernel(%arg0: i32, %arg1: memref<256x1xi32, #tpu.memory_space<vmem>>, %arg2: memref<64x128xf32, #tpu.memory_space<vmem>>, %arg3: memref<256x128xf32, #tpu.memory_space<vmem>>) attributes {dimension_semantics = [#tpu.dimension_semantics<parallel>], iteration_bounds = array<i64: 1>, scalar_prefetch = 0 : i64, scratch_operands = 0 : i64, tpu.core_type = #tpu.core_type<tc>, window_params = [{transform_indices = @transform_0, window_bounds = array<i64: 256, 1>}, {pipeline_mode = #tpu.pipeline_mode<synchronous>, transform_indices = @transform_1, window_bounds = array<i64: 64, 128>}, {transform_indices = @transform_2, window_bounds = array<i64: 256, 128>}]} {
    %c0 = arith.constant 0 : index
    %c0_0 = arith.constant 0 : index
    %0 = vector.load %arg1[%c0, %c0_0] : memref<256x1xi32, #tpu.memory_space<vmem>>, vector<256x1xi32>
    %1 = tpu.iota {dimensions = array<i32: 1>} : vector<256x64xi32>
    %2 = vector.broadcast %0 : vector<256x1xi32> to vector<256x64xi32>
    %3 = arith.cmpi eq, %2, %1 : vector<256x64xi32>
    %4 = arith.extui %3 : vector<256x64xi1> to vector<256x64xi32>
    %5 = arith.sitofp %4 : vector<256x64xi32> to vector<256x64xf32>
    %c0_1 = arith.constant 0 : index
    %c0_2 = arith.constant 0 : index
    %6 = vector.load %arg2[%c0_1, %c0_2] : memref<64x128xf32, #tpu.memory_space<vmem>>, vector<64x128xf32>
    %cst = arith.constant dense<0.000000e+00> : vector<256x128xf32>
    %7 = tpu.matmul %5, %6, %cst {dimension_numbers = #tpu.dot_dimension_numbers<[1], [0], [0], [1], [0, 0, 1, 1], [], []>} : vector<256x64xf32>, vector<64x128xf32>, vector<256x128xf32> -> vector<256x128xf32>
    %c0_3 = arith.constant 0 : index
    %c0_4 = arith.constant 0 : index
    %8 = vector.load %arg3[%c0_3, %c0_4] : memref<256x128xf32, #tpu.memory_space<vmem>>, vector<256x128xf32>
    tpu.vector_store %arg3[%c0_3, %c0_4], %7 {strides = array<i32>} : memref<256x128xf32, #tpu.memory_space<vmem>>, vector<256x128xf32>,
    return
  }
  func.func @transform_0(%arg0: i32) -> (i32, i32) {
    %c0_i32 = arith.constant 0 : i32
    %c0_i32_0 = arith.constant 0 : i32
    return %arg0, %c0_i32 : i32, i32
  }
  func.func @transform_1(%arg0: i32) -> (i32, i32) {
    %c0_i32 = arith.constant 0 : i32
    %c0_i32_0 = arith.constant 0 : i32
    %c0_i32_1 = arith.constant 0 : i32
    return %c0_i32, %c0_i32_0 : i32, i32
  }
  func.func @transform_2(%arg0: i32) -> (i32, i32) {
    %c0_i32 = arith.constant 0 : i32
    %c0_i32_0 = arith.constant 0 : i32
    return %arg0, %c0_i32 : i32, i32
  }
}

</mosaic_0001>

<llo_original>
// kernel: glove_embed.1
$region0: #{glove_embed.1}
  #allocation0 [shape = 'u32[]', space=smem, size = 0x4, offset = 0x4, fixed_abs, tag = 'smem constant byte address 0x4 - core index']
  #allocation1 [shape = 'u32[72,128]{1,0:T(1,128)}', space=vmem, size = 0x9000, scoped, tag = 'internal scratch']
  %s0 = inlined_call_operand.vmem [shape: s32[256,1], index: 0, kind: input, shape index: {}]
  %s1 = inlined_call_operand.vmem [shape: f32[64,128], index: 1, kind: input, shape index: {}]
  %s2 = inlined_call_operand.vmem [shape: f32[256,128], index: 2, kind: output, shape index: {}]
  %s3 = sld [smem:[#allocation0]]
  $region18: #{glove_embed.1} parent=0
    _
  %s5 = ssub.s32 1, %s3
  %s6 = scalar_select 0, %s5, %s3
  // Predicated region
  $region2: #{glove_embed.1} parent=0 // pred_check
    _
  $region3: #{glove_embed.1} parent=0 // pred_check_branch
    %8 = sbr.rel (0) target = $region5
  $region4: #{glove_embed.1} parent=0 // pred_region
    _
  $region5: #{glove_embed.1} parent=0 // pred_fallthru
    _
  // Predicated region
  $region6: #{glove_embed.1} parent=0 // pred_check
    _
  $region7: #{glove_embed.1} parent=0 // pred_check_branch
    %10 = sbr.rel (0) target = $region9
  $region8: #{glove_embed.1} parent=0 // pred_region
    _
  $region9: #{glove_embed.1} parent=0 // pred_fallthru
    _
  %v11 = vld [vmem:[%s0] sm:$0xff]
  %v12 = vld [vmem:[%s0 + $0x8] sm:$0xff]
  %v13 = vld [vmem:[%s0 + $0x10] sm:$0xff]
  %v14 = vld [vmem:[%s0 + $0x18] sm:$0xff]
  %v15 = vld [vmem:[%s0 + $0x20] sm:$0xff]
  %v16 = vld [vmem:[%s0 + $0x28] sm:$0xff]
  %v17 = vld [vmem:[%s0 + $0x30] sm:$0xff]
  %v18 = vld [vmem:[%s0 + $0x38] sm:$0xff]
  %v19 = vld [vmem:[%s0 + $0x40] sm:$0xff]
  %v20 = vld [vmem:[%s0 + $0x48] sm:$0xff]
  %v21 = vld [vmem:[%s0 + $0x50] sm:$0xff]
  %v22 = vld [vmem:[%s0 + $0x58] sm:$0xff]
  %v23 = vld [vmem:[%s0 + $0x60] sm:$0xff]
  %v24 = vld [vmem:[%s0 + $0x68] sm:$0xff]
  %v25 = vld [vmem:[%s0 + $0x70] sm:$0xff]
  %v26 = vld [vmem:[%s0 + $0x78] sm:$0xff]
  %v27 = vld [vmem:[%s0 + $0x80] sm:$0xff]
  %v28 = vld [vmem:[%s0 + $0x88] sm:$0xff]
  %v29 = vld [vmem:[%s0 + $0x90] sm:$0xff]
  %v30 = vld [vmem:[%s0 + $0x98] sm:$0xff]
  %v31 = vld [vmem:[%s0 + $0xa0] sm:$0xff]
  %v32 = vld [vmem:[%s0 + $0xa8] sm:$0xff]
  %v33 = vld [vmem:[%s0 + $0xb0] sm:$0xff]
  %v34 = vld [vmem:[%s0 + $0xb8] sm:$0xff]
  %v35 = vld [vmem:[%s0 + $0xc0] sm:$0xff]
  %v36 = vld [vmem:[%s0 + $0xc8] sm:$0xff]
  %v37 = vld [vmem:[%s0 + $0xd0] sm:$0xff]
  %v38 = vld [vmem:[%s0 + $0xd8] sm:$0xff]
  %v39 = vld [vmem:[%s0 + $0xe0] sm:$0xff]
  %v40 = vld [vmem:[%s0 + $0xe8] sm:$0xff]
  %v41 = vld [vmem:[%s0 + $0xf0] sm:$0xff]
  %v42 = vld [vmem:[%s0 + $0xf8] sm:$0xff]
  %v43 = vlaneseq
  %v44 = vand.u32 %v43, 127
  %45 = vset.pattern.permute.xlu0 0
  %46 = vperm.xlu0 %45, %v11
  %v47 = vpop.permute.xlu0 %46
  %48 = vset.pattern.permute.xlu0 0
  %49 = vperm.xlu0 %48, %v12
  %v50 = vpop.permute.xlu0 %49
  %51 = vset.pattern.permute.xlu0 0
  %52 = vperm.xlu0 %51, %v13
  %v53 = vpop.permute.xlu0 %52
  %54 = vset.pattern.permute.xlu0 0
  %55 = vperm.xlu0 %54, %v14
  %v56 = vpop.permute.xlu0 %55
  %57 = vset.pattern.permute.xlu0 0
  %58 = vperm.xlu0 %57, %v15
  %v59 = vpop.permute.xlu0 %58
  %60 = vset.pattern.permute.xlu0 0
  %61 = vperm.xlu0 %60, %v16
  %v62 = vpop.permute.xlu0 %61
  %63 = vset.pattern.permute.xlu0 0
  %64 = vperm.xlu0 %63, %v17
  %v65 = vpop.permute.xlu0 %64
  %66 = vset.pattern.permute.xlu0 0
  %67 = vperm.xlu0 %66, %v18
  %v68 = vpop.permute.xlu0 %67
  %69 = vset.pattern.permute.xlu0 0
  %70 = vperm.xlu0 %69, %v19
  %v71 = vpop.permute.xlu0 %70
  %72 = vset.pattern.permute.xlu0 0
  %73 = vperm.xlu0 %72, %v20
  %v74 = vpop.permute.xlu0 %73
  %75 = vset.pattern.permute.xlu0 0
  %76 = vperm.xlu0 %75, %v21
  %v77 = vpop.permute.xlu0 %76
  %78 = vset.pattern.permute.xlu0 0
  %79 = vperm.xlu0 %78, %v22
  %v80 = vpop.permute.xlu0 %79
  %81 = vset.pattern.permute.xlu0 0
  %82 = vperm.xlu0 %81, %v23
  %v83 = vpop.permute.xlu0 %82
  %84 = vset.pattern.permute.xlu0 0
  %85 = vperm.xlu0 %84, %v24
  %v86 = vpop.permute.xlu0 %85
  %87 = vset.pattern.permute.xlu0 0
  %88 = vperm.xlu0 %87, %v25
  %v89 = vpop.permute.xlu0 %88
  %90 = vset.pattern.permute.xlu0 0
  %91 = vperm.xlu0 %90, %v26
  %v92 = vpop.permute.xlu0 %91
  %93 = vset.pattern.permute.xlu0 0
  %94 = vperm.xlu0 %93, %v27
  %v95 = vpop.permute.xlu0 %94
  %96 = vset.pattern.permute.xlu0 0
  %97 = vperm.xlu0 %96, %v28
  %v98 = vpop.permute.xlu0 %97
  %99 = vset.pattern.permute.xlu0 0
  %100 = vperm.xlu0 %99, %v29
  %v101 = vpop.permute.xlu0 %100
  %102 = vset.pattern.permute.xlu0 0
  %103 = vperm.xlu0 %102, %v30
  %v104 = vpop.permute.xlu0 %103
  %105 = vset.pattern.permute.xlu0 0
  %106 = vperm.xlu0 %105, %v31
  %v107 = vpop.permute.xlu0 %106
  %108 = vset.pattern.permute.xlu0 0
  %109 = vperm.xlu0 %108, %v32
  %v110 = vpop.permute.xlu0 %109
  %111 = vset.pattern.permute.xlu0 0
  %112 = vperm.xlu0 %111, %v33
  %v113 = vpop.permute.xlu0 %112
  %114 = vset.pattern.permute.xlu0 0
  %115 = vperm.xlu0 %114, %v34
  %v116 = vpop.permute.xlu0 %115
  %117 = vset.pattern.permute.xlu0 0
  %118 = vperm.xlu0 %117, %v35
  %v119 = vpop.permute.xlu0 %118
  %120 = vset.pattern.permute.xlu0 0
  %121 = vperm.xlu0 %120, %v36
  %v122 = vpop.permute.xlu0 %121
  %123 = vset.pattern.permute.xlu0 0
  %124 = vperm.xlu0 %123, %v37
  %v125 = vpop.permute.xlu0 %124
  %126 = vset.pattern.permute.xlu0 0
  %127 = vperm.xlu0 %126, %v38
  %v128 = vpop.permute.xlu0 %127
  %129 = vset.pattern.permute.xlu0 0
  %130 = vperm.xlu0 %129, %v39
  %v131 = vpop.permute.xlu0 %130
  %132 = vset.pattern.permute.xlu0 0
  %133 = vperm.xlu0 %132, %v40
  %v134 = vpop.permute.xlu0 %133
  %135 = vset.pattern.permute.xlu0 0
  %136 = vperm.xlu0 %135, %v41
  %v137 = vpop.permute.xlu0 %136
  %138 = vset.pattern.permute.xlu0 0
  %139 = vperm.xlu0 %138, %v42
  %v140 = vpop.permute.xlu0 %139
  %vm141 = vcmp.eq.s32.totalorder %v47, %v44
  %vm142 = vcmp.eq.s32.totalorder %v50, %v44
  %vm143 = vcmp.eq.s32.totalorder %v53, %v44
  %vm144 = vcmp.eq.s32.totalorder %v56, %v44
  %vm145 = vcmp.eq.s32.totalorder %v59, %v44
  %vm146 = vcmp.eq.s32.totalorder %v62, %v44
  %vm147 = vcmp.eq.s32.totalorder %v65, %v44
  %vm148 = vcmp.eq.s32.totalorder %v68, %v44
  %vm149 = vcmp.eq.s32.totalorder %v71, %v44
  %vm150 = vcmp.eq.s32.totalorder %v74, %v44
  %vm151 = vcmp.eq.s32.totalorder %v77, %v44
  %vm152 = vcmp.eq.s32.totalorder %v80, %v44
  %vm153 = vcmp.eq.s32.totalorder %v83, %v44
  %vm154 = vcmp.eq.s32.totalorder %v86, %v44
  %vm155 = vcmp.eq.s32.totalorder %v89, %v44
  %vm156 = vcmp.eq.s32.totalorder %v92, %v44
  %vm157 = vcmp.eq.s32.totalorder %v95, %v44
  %vm158 = vcmp.eq.s32.totalorder %v98, %v44
  %vm159 = vcmp.eq.s32.totalorder %v101, %v44
  %vm160 = vcmp.eq.s32.totalorder %v104, %v44
  %vm161 = vcmp.eq.s32.totalorder %v107, %v44
  %vm162 = vcmp.eq.s32.totalorder %v110, %v44
  %vm163 = vcmp.eq.s32.totalorder %v113, %v44
  %vm164 = vcmp.eq.s32.totalorder %v116, %v44
  %vm165 = vcmp.eq.s32.totalorder %v119, %v44
  %vm166 = vcmp.eq.s32.totalorder %v122, %v44
  %vm167 = vcmp.eq.s32.totalorder %v125, %v44
  %vm168 = vcmp.eq.s32.totalorder %v128, %v44
  %vm169 = vcmp.eq.s32.totalorder %v131, %v44
  %vm170 = vcmp.eq.s32.totalorder %v134, %v44
  %vm171 = vcmp.eq.s32.totalorder %v137, %v44
  %vm172 = vcmp.eq.s32.totalorder %v140, %v44
  %v173 = vsel %vm141, 1, 0
  %v174 = vsel %vm142, 1, 0
  %v175 = vsel %vm143, 1, 0
  %v176 = vsel %vm144, 1, 0
  %v177 = vsel %vm145, 1, 0
  %v178 = vsel %vm146, 1, 0
  %v179 = vsel %vm147, 1, 0
  %v180 = vsel %vm148, 1, 0
  %v181 = vsel %vm149, 1, 0
  %v182 = vsel %vm150, 1, 0
  %v183 = vsel %vm151, 1, 0
  %v184 = vsel %vm152, 1, 0
  %v185 = vsel %vm153, 1, 0
  %v186 = vsel %vm154, 1, 0
  %v187 = vsel %vm155, 1, 0
  %v188 = vsel %vm156, 1, 0
  %v189 = vsel %vm157, 1, 0
  %v190 = vsel %vm158, 1, 0
  %v191 = vsel %vm159, 1, 0
  %v192 = vsel %vm160, 1, 0
  %v193 = vsel %vm161, 1, 0
  %v194 = vsel %vm162, 1, 0
  %v195 = vsel %vm163, 1, 0
  %v196 = vsel %vm164, 1, 0
  %v197 = vsel %vm165, 1, 0
  %v198 = vsel %vm166, 1, 0
  %v199 = vsel %vm167, 1, 0
  %v200 = vsel %vm168, 1, 0
  %v201 = vsel %vm169, 1, 0
  %v202 = vsel %vm170, 1, 0
  %v203 = vsel %vm171, 1, 0
  %v204 = vsel %vm172, 1, 0
  %v205 = vcvt.s32.f32 %v173
  %v206 = vcvt.s32.f32 %v174
  %v207 = vcvt.s32.f32 %v175
  %v208 = vcvt.s32.f32 %v176
  %v209 = vcvt.s32.f32 %v177
  %v210 = vcvt.s32.f32 %v178
  %v211 = vcvt.s32.f32 %v179
  %v212 = vcvt.s32.f32 %v180
  %v213 = vcvt.s32.f32 %v181
  %v214 = vcvt.s32.f32 %v182
  %v215 = vcvt.s32.f32 %v183
  %v216 = vcvt.s32.f32 %v184
  %v217 = vcvt.s32.f32 %v185
  %v218 = vcvt.s32.f32 %v186
  %v219 = vcvt.s32.f32 %v187
  %v220 = vcvt.s32.f32 %v188
  %v221 = vcvt.s32.f32 %v189
  %v222 = vcvt.s32.f32 %v190
  %v223 = vcvt.s32.f32 %v191
  %v224 = vcvt.s32.f32 %v192
  %v225 = vcvt.s32.f32 %v193
  %v226 = vcvt.s32.f32 %v194
  %v227 = vcvt.s32.f32 %v195
  %v228 = vcvt.s32.f32 %v196
  %v229 = vcvt.s32.f32 %v197
  %v230 = vcvt.s32.f32 %v198
  %v231 = vcvt.s32.f32 %v199
  %v232 = vcvt.s32.f32 %v200
  %v233 = vcvt.s32.f32 %v201
  %v234 = vcvt.s32.f32 %v202
  %v235 = vcvt.s32.f32 %v203
  %v236 = vcvt.s32.f32 %v204
  %v237 = vld [vmem:[%s1] sm:$0xff]
  %v238 = vld [vmem:[%s1 + $0x8] sm:$0xff]
  %v239 = vld [vmem:[%s1 + $0x10] sm:$0xff]
  %v240 = vld [vmem:[%s1 + $0x18] sm:$0xff]
  %v241 = vld [vmem:[%s1 + $0x20] sm:$0xff]
  %v242 = vld [vmem:[%s1 + $0x28] sm:$0xff]
  %v243 = vld [vmem:[%s1 + $0x30] sm:$0xff]
  %v244 = vld [vmem:[%s1 + $0x38] sm:$0xff]
  %vm245 = vcmask 523264
  %v247 = vsel %vm245, %v205, 0
  %v250 = vsel %vm245, %v206, 0
  %v253 = vsel %vm245, %v207, 0
  %v256 = vsel %vm245, %v208, 0
  %v259 = vsel %vm245, %v209, 0
  %v262 = vsel %vm245, %v210, 0
  %v265 = vsel %vm245, %v211, 0
  %v268 = vsel %vm245, %v212, 0
  %v271 = vsel %vm245, %v213, 0
  %v274 = vsel %vm245, %v214, 0
  %v277 = vsel %vm245, %v215, 0
  %v280 = vsel %vm245, %v216, 0
  %v283 = vsel %vm245, %v217, 0
  %v286 = vsel %vm245, %v218, 0
  %v289 = vsel %vm245, %v219, 0
  %v292 = vsel %vm245, %v220, 0
  %v295 = vsel %vm245, %v221, 0
  %v298 = vsel %vm245, %v222, 0
  %v301 = vsel %vm245, %v223, 0
  %v304 = vsel %vm245, %v224, 0
  %v307 = vsel %vm245, %v225, 0
  %v310 = vsel %vm245, %v226, 0
  %v313 = vsel %vm245, %v227, 0
  %v316 = vsel %vm245, %v228, 0
  %v319 = vsel %vm245, %v229, 0
  %v322 = vsel %vm245, %v230, 0
  %v325 = vsel %vm245, %v231, 0
  %v328 = vsel %vm245, %v232, 0
  %v331 = vsel %vm245, %v233, 0
  %v334 = vsel %vm245, %v234, 0
  %v337 = vsel %vm245, %v235, 0
  %v340 = vsel %vm245, %v236, 0
  %342 = vmatpush.msra.mxu0 0.0
  %343 = vmatpush.msra.mxu0 0.0
  %344 = vmatpush.msra.mxu0 0.0
  %345 = vmatpush.msra.mxu0 0.0
  %346 = vmatpush.msra.mxu0 0.0
  %347 = vmatpush.msra.mxu0 0.0
  %348 = vmatpush.msra.mxu0 0.0
  %349 = vmatpush.msra.mxu0 0.0
  %350 = vmatpush.msra.mxu0 %v244
  %351 = vmatpush.msra.mxu0 %v243
  %352 = vmatpush.msra.mxu0 %v242
  %353 = vmatpush.msra.mxu0 %v241
  %354 = vmatpush.msra.mxu0 %v240
  %355 = vmatpush.msra.mxu0 %v239
  %356 = vmatpush.msra.mxu0 %v238
  %357 = vmatpush.msra.mxu0 %v237
  %358 = vmatmul.f32.gmra.mxu0 %v247
  %v359 = vpop.f32.mrf.mxu0
  %v360 = vadd.f32 0.0, %v359
  %361 = vmatmul.f32.gmra.mxu0 %v250
  %v362 = vpop.f32.mrf.mxu0
  %v363 = vadd.f32 0.0, %v362
  %364 = vmatmul.f32.gmra.mxu0 %v253
  %v365 = vpop.f32.mrf.mxu0
  %v366 = vadd.f32 0.0, %v365
  %367 = vmatmul.f32.gmra.mxu0 %v256
  %v368 = vpop.f32.mrf.mxu0
  %v369 = vadd.f32 0.0, %v368
  %370 = vmatmul.f32.gmra.mxu0 %v259
  %v371 = vpop.f32.mrf.mxu0
  %v372 = vadd.f32 0.0, %v371
  %373 = vmatmul.f32.gmra.mxu0 %v262
  %v374 = vpop.f32.mrf.mxu0
  %v375 = vadd.f32 0.0, %v374
  %376 = vmatmul.f32.gmra.mxu0 %v265
  %v377 = vpop.f32.mrf.mxu0
  %v378 = vadd.f32 0.0, %v377
  %379 = vmatmul.f32.gmra.mxu0 %v268
  %v380 = vpop.f32.mrf.mxu0
  %v381 = vadd.f32 0.0, %v380
  %382 = vmatmul.f32.gmra.mxu0 %v271
  %v383 = vpop.f32.mrf.mxu0
  %v384 = vadd.f32 0.0, %v383
  %385 = vmatmul.f32.gmra.mxu0 %v274
  %v386 = vpop.f32.mrf.mxu0
  %v387 = vadd.f32 0.0, %v386
  %388 = vmatmul.f32.gmra.mxu0 %v277
  %v389 = vpop.f32.mrf.mxu0
  %v390 = vadd.f32 0.0, %v389
  %391 = vmatmul.f32.gmra.mxu0 %v280
  %v392 = vpop.f32.mrf.mxu0
  %v393 = vadd.f32 0.0, %v392
  %394 = vmatmul.f32.gmra.mxu0 %v283
  %v395 = vpop.f32.mrf.mxu0
  %v396 = vadd.f32 0.0, %v395
  %397 = vmatmul.f32.gmra.mxu0 %v286
  %v398 = vpop.f32.mrf.mxu0
  %v399 = vadd.f32 0.0, %v398
  %400 = vmatmul.f32.gmra.mxu0 %v289
  %v401 = vpop.f32.mrf.mxu0
  %v402 = vadd.f32 0.0, %v401
  %403 = vmatmul.f32.gmra.mxu0 %v292
  %v404 = vpop.f32.mrf.mxu0
  %v405 = vadd.f32 0.0, %v404
  %406 = vmatmul.f32.gmra.mxu0 %v295
  %v407 = vpop.f32.mrf.mxu0
  %v408 = vadd.f32 0.0, %v407
  %409 = vmatmul.f32.gmra.mxu0 %v298
  %v410 = vpop.f32.mrf.mxu0
  %v411 = vadd.f32 0.0, %v410
  %412 = vmatmul.f32.gmra.mxu0 %v301
  %v413 = vpop.f32.mrf.mxu0
  %v414 = vadd.f32 0.0, %v413
  %415 = vmatmul.f32.gmra.mxu0 %v304
  %v416 = vpop.f32.mrf.mxu0
  %v417 = vadd.f32 0.0, %v416
  %418 = vmatmul.f32.gmra.mxu0 %v307
  %v419 = vpop.f32.mrf.mxu0
  %v420 = vadd.f32 0.0, %v419
  %421 = vmatmul.f32.gmra.mxu0 %v310
  %v422 = vpop.f32.mrf.mxu0
  %v423 = vadd.f32 0.0, %v422
  %424 = vmatmul.f32.gmra.mxu0 %v313
  %v425 = vpop.f32.mrf.mxu0
  %v426 = vadd.f32 0.0, %v425
  %427 = vmatmul.f32.gmra.mxu0 %v316
  %v428 = vpop.f32.mrf.mxu0
  %v429 = vadd.f32 0.0, %v428
  %430 = vmatmul.f32.gmra.mxu0 %v319
  %v431 = vpop.f32.mrf.mxu0
  %v432 = vadd.f32 0.0, %v431
  %433 = vmatmul.f32.gmra.mxu0 %v322
  %v434 = vpop.f32.mrf.mxu0
  %v435 = vadd.f32 0.0, %v434
  %436 = vmatmul.f32.gmra.mxu0 %v325
  %v437 = vpop.f32.mrf.mxu0
  %v438 = vadd.f32 0.0, %v437
  %439 = vmatmul.f32.gmra.mxu0 %v328
  %v440 = vpop.f32.mrf.mxu0
  %v441 = vadd.f32 0.0, %v440
  %442 = vmatmul.f32.gmra.mxu0 %v331
  %v443 = vpop.f32.mrf.mxu0
  %v444 = vadd.f32 0.0, %v443
  %445 = vmatmul.f32.gmra.mxu0 %v334
  %v446 = vpop.f32.mrf.mxu0
  %v447 = vadd.f32 0.0, %v446
  %448 = vmatmul.f32.gmra.mxu0 %v337
  %v449 = vpop.f32.mrf.mxu0
  %v450 = vadd.f32 0.0, %v449
  %451 = vmatmul.f32.gmra.mxu0 %v340
  %v452 = vpop.f32.mrf.mxu0
  %v453 = vadd.f32 0.0, %v452
  %454 = vdwg.mxu0
  %455 = vst [vmem:[%s2] sm:$0xff] %v360
  %456 = vst [vmem:[%s2 + $0x8] sm:$0xff] %v363
  %457 = vst [vmem:[%s2 + $0x10] sm:$0xff] %v366
  %458 = vst [vmem:[%s2 + $0x18] sm:$0xff] %v369
  %459 = vst [vmem:[%s2 + $0x20] sm:$0xff] %v372
  %460 = vst [vmem:[%s2 + $0x28] sm:$0xff] %v375
  %461 = vst [vmem:[%s2 + $0x30] sm:$0xff] %v378
  %462 = vst [vmem:[%s2 + $0x38] sm:$0xff] %v381
  %463 = vst [vmem:[%s2 + $0x40] sm:$0xff] %v384
  %464 = vst [vmem:[%s2 + $0x48] sm:$0xff] %v387
  %465 = vst [vmem:[%s2 + $0x50] sm:$0xff] %v390
  %466 = vst [vmem:[%s2 + $0x58] sm:$0xff] %v393
  %467 = vst [vmem:[%s2 + $0x60] sm:$0xff] %v396
  %468 = vst [vmem:[%s2 + $0x68] sm:$0xff] %v399
  %469 = vst [vmem:[%s2 + $0x70] sm:$0xff] %v402
  %470 = vst [vmem:[%s2 + $0x78] sm:$0xff] %v405
  %471 = vst [vmem:[%s2 + $0x80] sm:$0xff] %v408
  %472 = vst [vmem:[%s2 + $0x88] sm:$0xff] %v411
  %473 = vst [vmem:[%s2 + $0x90] sm:$0xff] %v414
  %474 = vst [vmem:[%s2 + $0x98] sm:$0xff] %v417
  %475 = vst [vmem:[%s2 + $0xa0] sm:$0xff] %v420
  %476 = vst [vmem:[%s2 + $0xa8] sm:$0xff] %v423
  %477 = vst [vmem:[%s2 + $0xb0] sm:$0xff] %v426
  %478 = vst [vmem:[%s2 + $0xb8] sm:$0xff] %v429
  %479 = vst [vmem:[%s2 + $0xc0] sm:$0xff] %v432
  %480 = vst [vmem:[%s2 + $0xc8] sm:$0xff] %v435
  %481 = vst [vmem:[%s2 + $0xd0] sm:$0xff] %v438
  %482 = vst [vmem:[%s2 + $0xd8] sm:$0xff] %v441
  %483 = vst [vmem:[%s2 + $0xe0] sm:$0xff] %v444
  %484 = vst [vmem:[%s2 + $0xe8] sm:$0xff] %v447
  %485 = vst [vmem:[%s2 + $0xf0] sm:$0xff] %v450
  %486 = vst [vmem:[%s2 + $0xf8] sm:$0xff] %v453
  // Predicated region
  $region10: #{glove_embed.1} parent=0 // pred_check
    _
  $region11: #{glove_embed.1} parent=0 // pred_check_branch
    %488 = sbr.rel (0) target = $region13
  $region12: #{glove_embed.1} parent=0 // pred_region
    _
  $region13: #{glove_embed.1} parent=0 // pred_fallthru
    _
  // Predicated region
  $region14: #{glove_embed.1} parent=0 // pred_check
    _
  $region15: #{glove_embed.1} parent=0 // pred_check_branch
    %490 = sbr.rel (0) target = $region17
  $region16: #{glove_embed.1} parent=0 // pred_region
    _
  $region17: #{glove_embed.1} parent=0 // pred_fallthru
    _

</llo_original>
